<compile_context>
chip_gen: v7x
topology: tpu7x:2x2x1
jax: 0.10.0
libtpu: 0.0.40
codegen_flags: <defaults>
</compile_context>

<pallas_src>
import jax
import jax.numpy as jnp
from jax import lax
from jax.experimental import pallas as pl
from jax.experimental.pallas import tpu as pltpu


def _round_up(v, m):
    return ((v + m - 1) // m) * m


def _vmem_capacity_bytes():
    """Physical VMEM per TensorCore; conservative fallback if unknown."""
    try:
        info = pltpu.get_tpu_info()
        for attr in ("vmem_capacity_bytes", "vmem_bytes", "vmem_size_bytes"):
            val = getattr(info, attr, None)
            if val:
                return int(val)
    except Exception:
        pass
    return 64 << 20  # v7x per-TC physical VMEM (smallest across v5e/v6e/v7x)


def _masked_softmax_neg(energy, c_real, c_pad, approx_recip):
    """softmax(rowmax(E) - E) == softmax(-E); single stable shift.

    Padded channel *columns* (index >= c_real) are excluded from the row
    reduction and normalization; padded rows only produce values that the
    wrapper slices away.  `shifted` is always <= 0, so exp never overflows.
    """
    if c_pad != c_real:
        col = lax.broadcasted_iota(jnp.int32, (c_pad, c_pad), 1)
        valid = col < c_real
        energy = jnp.where(valid, energy, jnp.float32(1e30))
    shifted = jnp.min(energy, axis=-1, keepdims=True) - energy
    pexp = jnp.exp(shifted)
    if c_pad != c_real:
        pexp = jnp.where(valid, pexp, 0.0)
    denom = jnp.sum(pexp, axis=-1, keepdims=True)
    return pexp * pl.reciprocal(denom, approx=approx_recip)


# --------------------------------------------------------------------------
# Resident single-pass kernel: grid=(B,), one (C_pad, N_pad) slab per step.
# --------------------------------------------------------------------------
def _make_resident_kernel(c_real, c_pad, matmul_dtype, approx_recip):
    def kernel(gamma_ref, x_ref, o_ref):
        # gamma_ref: SMEM (1,) f32 (scalar prefetch)
        # x_ref / o_ref: VMEM (c_pad, n_pad) slab (batch dim squeezed)
        x = x_ref[...]
        x_mm = x.astype(matmul_dtype)
        # energy = X @ X^T contracting the last (lane) dim of both operands,
        # so no transposed copy is materialized.  Zero-padded spatial columns
        # contribute 0, so no spatial masking is required.
        energy = lax.dot_general(
            x_mm, x_mm,
            dimension_numbers=(((1,), (1,)), ((), ())),
            preferred_element_type=jnp.float32)
        attn = _masked_softmax_neg(energy, c_real, c_pad, approx_recip)
        # Fold gamma into the attention before the apply matmul.
        attn = (gamma_ref[0] * attn).astype(matmul_dtype)
        av = jnp.dot(attn, x_mm, preferred_element_type=jnp.float32)
        o_ref[...] = (av + x.astype(jnp.float32)).astype(o_ref.dtype)

    return kernel


# --------------------------------------------------------------------------
# Chunked two-pass fallback kernel: grid=(B, 2, nt).
#   pass 0: accumulate energy = X @ X^T into a (C_pad, C_pad) f32 scratch.
#   pass 1, chunk 0: energy -> gamma-folded attention in a matmul-dtype
#                    scratch (once per batch).
#   pass 1, each chunk: out_chunk = attn @ X_chunk + X_chunk.
# --------------------------------------------------------------------------
def _make_chunked_kernel(c_real, c_pad, matmul_dtype, approx_recip):
    def kernel(gamma_ref, x_ref, o_ref, acc_ref, attn_ref):
        p = pl.program_id(1)   # 0: accumulate energy, 1: apply attention
        t = pl.program_id(2)   # spatial chunk index

        x = x_ref[...]
        x_mm = x.astype(matmul_dtype)

        @pl.when((p == 0) & (t == 0))
        def _():
            acc_ref[...] = jnp.zeros_like(acc_ref)

        @pl.when(p == 0)
        def _():
            acc_ref[...] += lax.dot_general(
                x_mm, x_mm,
                dimension_numbers=(((1,), (1,)), ((), ())),
                preferred_element_type=jnp.float32)

        @pl.when((p == 1) & (t == 0))
        def _():
            attn = _masked_softmax_neg(acc_ref[...], c_real, c_pad,
                                       approx_recip)
            # gamma folded once per batch; stored in the matmul dtype so the
            # per-chunk apply does no recast and no extra VPU multiply.
            attn_ref[...] = (gamma_ref[0] * attn).astype(attn_ref.dtype)

        @pl.when(p == 1)
        def _():
            av = jnp.dot(attn_ref[...], x_mm,
                         preferred_element_type=jnp.float32)
            # residual cast only materialized on pass 1
            o_ref[...] = (av + x.astype(jnp.float32)).astype(o_ref.dtype)

    return kernel


def _pick_tn(n128, tn_max):
    """Largest multiple of 128 (<= tn_max) minimizing spatial pad waste."""
    tn_max = max(128, (tn_max // 128) * 128)
    if n128 <= tn_max:
        return n128
    best_tn, best_waste = None, None
    for tn in range(tn_max, 127, -128):
        waste = (-n128) % tn
        if best_waste is None or waste < best_waste:
            best_tn, best_waste = tn, waste
            if waste == 0:
                break
    return best_tn


def cam_module_forward(x, gamma, *, tn_max=2048, matmul_dtype=jnp.bfloat16,
                       force_chunked=False):
    """Channel attention: gamma * softmax(rowmax(XX^T) - XX^T) @ X + X.

    x: (B, C, H, W), gamma: scalar / (1,).  Returns (B, C, H, W) in x.dtype.
    """
    B, C, H, W = x.shape
    N = H * W
    c_pad = _round_up(C, 8)        # sublane multiple
    n128 = _round_up(N, 128)       # lane multiple

    in_itemsize = jnp.dtype(x.dtype).itemsize
    mm_itemsize = jnp.dtype(matmul_dtype).itemsize
    approx_recip = jnp.dtype(matmul_dtype) != jnp.dtype(jnp.float32)

    vmem_cap = int(_vmem_capacity_bytes() * 0.85)
    gamma = jnp.asarray(gamma, jnp.float32).reshape((1,))

    # ---------------- resident single-pass feasibility ----------------
    slab_bytes = c_pad * n128 * in_itemsize
    resident_temps = (c_pad * n128 * mm_itemsize     # matmul-dtype copy of X
                      + 2 * c_pad * n128 * 4         # f32 av + residual add
                      + 4 * c_pad * c_pad * 4)       # energy / softmax temps
    # 2x double-buffered input + 2x double-buffered output + temps + slack
    resident_bytes = 4 * slab_bytes + resident_temps + (2 << 20)
    use_resident = (not force_chunked) and resident_bytes <= vmem_cap

    if use_resident:
        n_pad = n128
        xf = x.reshape(B, C, N)
        if c_pad != C or n_pad != N:
            xf = jnp.pad(xf, ((0, 0), (0, c_pad - C), (0, n_pad - N)))

        cost = pl.CostEstimate(
            flops=4 * B * c_pad * c_pad * n_pad,
            transcendentals=B * c_pad * c_pad,
            bytes_accessed=2 * B * c_pad * n_pad * in_itemsize)

        kernel = _make_resident_kernel(C, c_pad, matmul_dtype, approx_recip)
        out = pl.pallas_call(
            kernel,
            out_shape=jax.ShapeDtypeStruct((B, c_pad, n_pad), x.dtype),
            grid_spec=pltpu.PrefetchScalarGridSpec(
                num_scalar_prefetch=1,                 # gamma -> SMEM
                grid=(B,),
                in_specs=[pl.BlockSpec((pl.Squeezed(), c_pad, n_pad),
                                       lambda b, g: (b, 0, 0))],
                out_specs=pl.BlockSpec((pl.Squeezed(), c_pad, n_pad),
                                       lambda b, g: (b, 0, 0)),
            ),
            compiler_params=pltpu.CompilerParams(
                dimension_semantics=("parallel",),
                vmem_limit_bytes=int(min(max(resident_bytes, 32 << 20),
                                         vmem_cap)),
            ),
            cost_estimate=cost,
        )(gamma, xf)
        return out[:, :C, :N].reshape(B, C, H, W)

    # ---------------- chunked two-pass fallback ------------------------
    tn = _pick_tn(n128, tn_max)

    def chunk_bytes(tn_):
        blocks = 2 * 2 * c_pad * tn_ * in_itemsize       # dbl-buf in + out
        temps = (c_pad * tn_ * mm_itemsize               # matmul-dtype X copy
                 + 2 * c_pad * tn_ * 4                   # f32 av + residual
                 + 4 * c_pad * c_pad * 4)                # softmax temps
        scratch = c_pad * c_pad * (4 + mm_itemsize)      # energy + attn
        return blocks + temps + scratch + (2 << 20)

    while tn > 128 and chunk_bytes(tn) > vmem_cap:
        tn = max(128, ((tn // 2) // 128) * 128)

    n_pad = _round_up(n128, tn)
    nt = n_pad // tn

    xf = x.reshape(B, C, N)
    if c_pad != C or n_pad != N:
        xf = jnp.pad(xf, ((0, 0), (0, c_pad - C), (0, n_pad - N)))

    cost = pl.CostEstimate(
        flops=4 * B * c_pad * c_pad * n_pad,
        transcendentals=B * c_pad * c_pad,
        bytes_accessed=3 * B * c_pad * n_pad * in_itemsize)

    kernel = _make_chunked_kernel(C, c_pad, matmul_dtype, approx_recip)
    out = pl.pallas_call(
        kernel,
        out_shape=jax.ShapeDtypeStruct((B, c_pad, n_pad), x.dtype),
        grid_spec=pltpu.PrefetchScalarGridSpec(
            num_scalar_prefetch=1,                       # gamma -> SMEM
            grid=(B, 2, nt),                             # (batch, pass, chunk)
            in_specs=[pl.BlockSpec((pl.Squeezed(), c_pad, tn),
                                   lambda b, p, t, g: (b, 0, t))],
            # Pin the output block to chunk 0 during the energy pass so every
            # output block is DMA'd back exactly once (during pass 1).
            out_specs=pl.BlockSpec((pl.Squeezed(), c_pad, tn),
                                   lambda b, p, t, g: (b, 0, p * t)),
            scratch_shapes=[pltpu.VMEM((c_pad, c_pad), jnp.float32),
                            pltpu.VMEM((c_pad, c_pad), matmul_dtype)],
        ),
        compiler_params=pltpu.CompilerParams(
            dimension_semantics=("parallel", "arbitrary", "arbitrary"),
            vmem_limit_bytes=int(min(max(chunk_bytes(tn), 32 << 20),
                                     vmem_cap)),
        ),
        cost_estimate=cost,
    )(gamma, xf)
    return out[:, :C, :N].reshape(B, C, H, W)


def cam_module_reference(x, gamma, *, matmul_dtype=jnp.float32):
    """Direct port of CAM_Module.forward.  `matmul_dtype` lets the test match
    the kernel's reduced-precision MXU operands (bf16 in, f32 accumulate)."""
    B, C, H, W = x.shape
    xf = x.reshape(B, C, -1).astype(jnp.float32)
    xm = xf.astype(matmul_dtype)
    prec = lax.Precision.HIGHEST
    energy = jnp.einsum("bcn,bdn->bcd", xm, xm,
                        preferred_element_type=jnp.float32, precision=prec)
    energy_new = jnp.max(energy, axis=-1, keepdims=True) - energy
    attention = jax.nn.softmax(energy_new, axis=-1)
    out = jnp.einsum("bcd,bdn->bcn", attention.astype(matmul_dtype), xm,
                     preferred_element_type=jnp.float32, precision=prec)
    out = gamma.reshape(()) * out + xf
    return out.reshape(B, C, H, W).astype(x.dtype)


if __name__ == "__main__":
    key = jax.random.PRNGKey(0)
    k0, k1 = jax.random.split(key)

    B, C, H, W = 2, 4, 16, 16
    x = jax.random.normal(k0, (B, C, H, W), dtype=jnp.float32)

    # gamma initialized to zeros, as in CAM_Module.__init__ -> output == input.
    gamma0 = jnp.zeros((1,), dtype=jnp.float32)
    out0 = jax.block_until_ready(cam_module_forward(x, gamma0))
    assert jnp.allclose(out0, x, atol=1e-6), "gamma=0 must reproduce the input"

    gamma = jnp.full((1,), 0.5, dtype=jnp.float32)

    # Resident single-pass path, f32 MXU operands, exact reciprocal.
    out_f32 = jax.block_until_ready(
        cam_module_forward(x, gamma, matmul_dtype=jnp.float32))
    ref_f32 = cam_module_reference(x, gamma, matmul_dtype=jnp.float32)
    assert jnp.allclose(out_f32, ref_f32, atol=1e-2, rtol=1e-2)

    # Resident path, bf16 MXU operands (f32 accumulation), precision-matched
    # reference.  Tolerance covers bf16 quantization of the gamma-folded
    # attention weights and the approximate EUP reciprocal.
    out_bf16 = jax.block_until_ready(cam_module_forward(x, gamma))
    ref_bf16 = cam_module_reference(x, gamma, matmul_dtype=jnp.bfloat16)
    assert jnp.allclose(out_bf16, ref_bf16, atol=3e-2, rtol=3e-2)

    # Chunked two-pass fallback (forced; tn=128 -> 2 spatial chunks).
    out_chunk = jax.block_until_ready(
        cam_module_forward(x, gamma, matmul_dtype=jnp.float32,
                           force_chunked=True, tn_max=128))
    assert jnp.allclose(out_chunk, ref_f32, atol=1e-2, rtol=1e-2)

    # Odd shapes exercise the channel (sublane) padding + masked softmax and
    # the spatial (lane) padding paths: C=5, H*W=63.
    x_odd = jax.random.normal(k1, (2, 5, 7, 9), dtype=jnp.float32)
    gamma_odd = jnp.full((1,), 0.7, dtype=jnp.float32)
    out_odd = jax.block_until_ready(
        cam_module_forward(x_odd, gamma_odd, matmul_dtype=jnp.float32))
    ref_odd = cam_module_reference(x_odd, gamma_odd, matmul_dtype=jnp.float32)
    assert jnp.allclose(out_odd, ref_odd, atol=1e-2, rtol=1e-2)

    print("KERNEL_OK")
</pallas_src>

<mosaic_0001>
module attributes {stable_mosaic.version = 11 : i64} {
  func.func @kernel(%arg0: i32, %arg1: memref<1xf32, #tpu.memory_space<smem>>, %arg2: memref<1x8x256xf32, #tpu.memory_space<vmem>>, %arg3: memref<1x8x256xf32, #tpu.memory_space<vmem>>) attributes {dimension_semantics = [#tpu.dimension_semantics<parallel>], iteration_bounds = array<i64: 2>, scalar_prefetch = 1 : i64, scratch_operands = 0 : i64, tpu.core_type = #tpu.core_type<tc>, window_params = [{transform_indices = @transform_0, window_bounds = array<i64: 1, 8, 256>}, {transform_indices = @transform_1, window_bounds = array<i64: 1, 8, 256>}]} {
    %c0 = arith.constant 0 : index
    %c0_0 = arith.constant 0 : index
    %c0_1 = arith.constant 0 : index
    %0 = vector.load %arg2[%c0, %c0_0, %c0_1] : memref<1x8x256xf32, #tpu.memory_space<vmem>>, vector<1x8x256xf32>
    %1 = vector.shape_cast %0 : vector<1x8x256xf32> to vector<8x256xf32>
    %2 = arith.truncf %1 : vector<8x256xf32> to vector<8x256xbf16>
    %cst = arith.constant dense<0.000000e+00> : vector<8x8xf32>
    %3 = tpu.matmul %2, %2, %cst {dimension_numbers = #tpu.dot_dimension_numbers<[1], [1], [0], [0], [0, 0, 1, 0], [], []>} : vector<8x256xbf16>, vector<8x256xbf16>, vector<8x8xf32> -> vector<8x8xf32>
    %4 = tpu.iota {dimensions = array<i32: 1>} : vector<8x8xi32>
    %c4_i32 = arith.constant 4 : i32
    %5 = vector.broadcast %c4_i32 : i32 to vector<8x8xi32>
    %6 = arith.cmpi slt, %4, %5 : vector<8x8xi32>
    %cst_2 = arith.constant 1.000000e+30 : f32
    %7 = vector.broadcast %cst_2 : f32 to vector<8x8xf32>
    %8 = arith.select %6, %3, %7 : vector<8x8xi1>, vector<8x8xf32>
    %cst_3 = arith.constant dense<0x7F800000> : vector<8xf32>
    %9 = vector.multi_reduction <minimumf>, %8, %cst_3 [1] : vector<8x8xf32> to vector<8xf32>
    %10 = vector.shape_cast %9 : vector<8xf32> to vector<8x1xf32>
    %11 = vector.broadcast %10 : vector<8x1xf32> to vector<8x8xf32>
    %12 = arith.subf %11, %8 : vector<8x8xf32>
    %13 = math.exp %12 : vector<8x8xf32>
    %cst_4 = arith.constant 0.000000e+00 : f32
    %14 = vector.broadcast %cst_4 : f32 to vector<8x8xf32>
    %15 = arith.select %6, %13, %14 : vector<8x8xi1>, vector<8x8xf32>
    %cst_5 = arith.constant dense<0.000000e+00> : vector<8xf32>
    %16 = vector.multi_reduction <add>, %15, %cst_5 [1] : vector<8x8xf32> to vector<8xf32>
    %17 = vector.shape_cast %16 : vector<8xf32> to vector<8x1xf32>
    %18 = tpu.reciprocal %17 {approx = true} : vector<8x1xf32> -> vector<8x1xf32>
    %19 = vector.broadcast %18 : vector<8x1xf32> to vector<8x8xf32>
    %20 = arith.mulf %15, %19 : vector<8x8xf32>
    %c0_6 = arith.constant 0 : index
    %21 = memref.load %arg1[%c0_6] : memref<1xf32, #tpu.memory_space<smem>>
    %22 = vector.broadcast %21 : f32 to vector<8x8xf32>
    %23 = arith.mulf %22, %20 : vector<8x8xf32>
    %24 = arith.truncf %23 : vector<8x8xf32> to vector<8x8xbf16>
    %cst_7 = arith.constant dense<0.000000e+00> : vector<8x256xf32>
    %25 = tpu.matmul %24, %2, %cst_7 {dimension_numbers = #tpu.dot_dimension_numbers<[1], [0], [0], [1], [0, 0, 1, 1], [], []>} : vector<8x8xbf16>, vector<8x256xbf16>, vector<8x256xf32> -> vector<8x256xf32>
    %26 = arith.addf %25, %1 : vector<8x256xf32>
    %c0_8 = arith.constant 0 : index
    %c0_9 = arith.constant 0 : index
    %c0_10 = arith.constant 0 : index
    %27 = vector.load %arg3[%c0_8, %c0_9, %c0_10] : memref<1x8x256xf32, #tpu.memory_space<vmem>>, vector<1x8x256xf32>
    %28 = vector.shape_cast %27 : vector<1x8x256xf32> to vector<8x256xf32>
    %29 = vector.shape_cast %26 : vector<8x256xf32> to vector<1x8x256xf32>
    tpu.vector_store %arg3[%c0_8, %c0_9, %c0_10], %29 {strides = array<i32>} : memref<1x8x256xf32, #tpu.memory_space<vmem>>, vector<1x8x256xf32>,
    return
  }
  func.func @transform_0(%arg0: i32, %arg1: memref<1xf32, #tpu.memory_space<smem>>) -> (i32, i32, i32) {
    %c0_i32 = arith.constant 0 : i32
    %c0_i32_0 = arith.constant 0 : i32
    %c0_i32_1 = arith.constant 0 : i32
    return %arg0, %c0_i32, %c0_i32_0 : i32, i32, i32
  }
  func.func @transform_1(%arg0: i32, %arg1: memref<1xf32, #tpu.memory_space<smem>>) -> (i32, i32, i32) {
    %c0_i32 = arith.constant 0 : i32
    %c0_i32_0 = arith.constant 0 : i32
    %c0_i32_1 = arith.constant 0 : i32
    return %arg0, %c0_i32, %c0_i32_0 : i32, i32, i32
  }
}

</mosaic_0001>

<llo_original>
// kernel: tpu_custom_call.1
$region0: #{tpu_custom_call.1}
  #allocation0 [shape = 'u32[]', space=smem, size = 0x4, offset = 0x4, fixed_abs, tag = 'smem constant byte address 0x4 - core index']
  #allocation1 [shape = 'u32[144,128]{1,0:T(1,128)}', space=vmem, size = 0x12000, scoped, tag = 'internal scratch']
  #allocation2 [shape = 's32[1]{0}', space=sflag, size = 0x4, scoped, tag = 'scoped memory for tpu_custom_call.1']
  #allocation3 [shape = 'f32[1]{0:T(128)S(6)}', space=smem, size = 0x200, scoped, tag = 'prefetched SMEM operand 0']
  %s0 = inlined_call_operand.<no memory space> [shape: f32[1], index: 0, kind: input, shape index: {}]
  %s1 = inlined_call_operand.hbm [shape: f32[2,8,256], index: 1, kind: input, shape index: {}]
  %s2 = inlined_call_operand.hbm [shape: f32[2,8,256], index: 2, kind: output, shape index: {}]
  %s3 = sld [smem:[#allocation0]]
  $region41: #{tpu_custom_call.1} parent=0
    _
  %s5 = ssub.s32 1, %s3
  %s6 = scalar_select 0, %s5, %s3
  %7 = sst [smem:[#allocation3]] %s0
  $region1: #{tpu_custom_call.1} parent=0
    #allocation4 [shape = 'u8[16384]{0}', space=vmem, size = 0x4000, scoped, tag = 'input window, operand 1']
    #allocation5 [shape = 's32[2]{0}', space=sflag, size = 0x8, scoped, tag = 'scoped memory for tpu_custom_call.1']
    #allocation6 [shape = 's32[2]{0}', space=sflag, size = 0x8, scoped, tag = 'scoped memory for tpu_custom_call.1']
    #allocation7 [shape = 'u8[16384]{0}', space=vmem, size = 0x4000, scoped, tag = 'output window, operand 0']
    %8 = vsyncpa [#allocation5], 0
    %s9 = scalar_lea.sflag [#allocation5], 1
    %10 = vsyncpa %s9, 0
    %11 = vsyncpa [#allocation6], 0
    %s12 = scalar_lea.sflag [#allocation6], 1
    %13 = vsyncpa %s12, 0
    loop: start=0, step=1, limit=4
    $region2: #{tpu_custom_call.1} parent=1 // loop_pre_header
      _
    $region3: #{tpu_custom_call.1} parent=1 // loop_header
      %s15 = sphi 0, %s19
      %p16 = scmp.ge.s32.totalorder %s15, 4
      %s25 = sphi 0, %s27
      %s28 = sphi 0, %s25
      %s29 = sphi 0, %s28
      %s45 = sphi 0, %s29
      %s51 = sphi 0, %s53
      %s54 = sphi 0, %s51
      %s55 = sphi 0, %s54
      %s71 = sphi 0, %s55
    $region4: #{tpu_custom_call.1} parent=1 // loop_header_branch
      %18 = sbr.rel (%p16) target = $region8
    $region5: #{tpu_custom_call.1} parent=1 // loop_body
      %s20 = ssub.s32 %s15, 1
      %s21 = ssub.s32 %s15, 2
      %s22 = sadd.s32 %s15, 1
      %s23 = ssub.s32 %s15, %s22
      %p24 = scmp.eq.s32.totalorder %s23, 0
      %s26 = sadd.s32 %s25, 1
      %s27 = scalar_select %p24, %s25, %s26
      %p30 = pneg %p24
      %p31 = scmp.eq.s32.totalorder %s15, 1
      %p32 = por %p30, %p31
      %p33 = scmp.ne.s32.totalorder %s25, %s28
      %p34 = scmp.eq.s32.totalorder %s15, 0
      %p35 = por %p33, %p34
      %p36 = scmp.ne.s32.totalorder %s25, %s28
      %p37 = scmp.eq.s32.totalorder %s20, 1
      %p38 = por %p36, %p37
      %p39 = scmp.ne.s32.totalorder %s28, %s29
      %p40 = scmp.eq.s32.totalorder %s20, 0
      %p41 = por %p39, %p40
      %p42 = scmp.ne.s32.totalorder %s28, %s29
      %p43 = scmp.eq.s32.totalorder %s21, 1
      %p44 = por %p42, %p43
      %p46 = scmp.ne.s32.totalorder %s29, %s45
      %p47 = scmp.eq.s32.totalorder %s21, 0
      %p48 = por %p46, %p47
      %s49 = ssub.s32 %s15, %s22
      %p50 = scmp.eq.s32.totalorder %s49, 0
      %s52 = sadd.s32 %s51, 1
      %s53 = scalar_select %p50, %s51, %s52
      %p56 = pneg %p50
      %p57 = scmp.eq.s32.totalorder %s15, 1
      %p58 = por %p56, %p57
      %p59 = scmp.ne.s32.totalorder %s51, %s54
      %p60 = scmp.eq.s32.totalorder %s15, 0
      %p61 = por %p59, %p60
      %p62 = scmp.ne.s32.totalorder %s51, %s54
      %p63 = scmp.eq.s32.totalorder %s20, 1
      %p64 = por %p62, %p63
      %p65 = scmp.ne.s32.totalorder %s54, %s55
      %p66 = scmp.eq.s32.totalorder %s20, 0
      %p67 = por %p65, %p66
      %p68 = scmp.ne.s32.totalorder %s54, %s55
      %p69 = scmp.eq.s32.totalorder %s21, 1
      %p70 = por %p68, %p69
      %p72 = scmp.ne.s32.totalorder %s55, %s71
      %p73 = scmp.eq.s32.totalorder %s21, 0
      %p74 = por %p72, %p73
      %p75 = scmp.le.s32.totalorder 1, %s15
      %p76 = scmp.lt.s32.totalorder %s15, 3
      %p77 = pnand %p75, %p76
      %p78 = pneg %p77
      // Predicated region
      $region9: #{tpu_custom_call.1} parent=5 // pred_check
        _
      $region10: #{tpu_custom_call.1} parent=5 // pred_check_branch
        %80 = sbr.rel (%p77) target = $region12
      $region11: #{tpu_custom_call.1} parent=5 // pred_region
        %s81 = ssub.s32 %s15, 1
      $region12: #{tpu_custom_call.1} parent=5 // pred_fallthru
        _
      %p82 = scmp.lt.s32.totalorder %s15, 2
      // Predicated region
      $region13: #{tpu_custom_call.1} parent=5 // pred_check
        %p83 = pneg %p82
      $region14: #{tpu_custom_call.1} parent=5 // pred_check_branch
        %85 = sbr.rel (%p83) target = $region16
      $region15: #{tpu_custom_call.1} parent=5 // pred_region
        // Predicated region
        $region17: #{tpu_custom_call.1} parent=15 // pred_check
          %p86 = pneg %p35
        $region18: #{tpu_custom_call.1} parent=15 // pred_check_branch
          %88 = sbr.rel (%p86) target = $region20
        $region19: #{tpu_custom_call.1} parent=15 // pred_region
          %s89 = sand.u32 %s25, 1
          %s90 = scalar_lea.sflag [#allocation5], %s89
          %s91 = sand.u32 %s25, 1
          %s92 = smul.addr %s91, 16
          %s93 = scalar_lea.vmem [#allocation4], %s92
          %s95 = ssub.s32 256, 256
          %96 = vsyncadd %s90, %s95
          %s97 = smul.addr %s15, 2
          %s98 = smul.addr %s97, 128
          %s99 = scalar_lea.hbm %s1, %s98
          %s101 = sshll.u32 %s93, 4
          %s102 = int_to_ptr.vmem [resolvable:$true] %s101
          %104 = dma.hbm_to_vmem [thread:$0]  %s99, 256, %s102, %s90
        $region20: #{tpu_custom_call.1} parent=15 // pred_fallthru
          _
      $region16: #{tpu_custom_call.1} parent=5 // pred_fallthru
        _
      %p105 = scmp.le.s32.totalorder 1, %s15
      %p106 = scmp.lt.s32.totalorder %s15, 3
      %p107 = pnand %p105, %p106
      %p108 = pneg %p107
      // Predicated region
      $region21: #{tpu_custom_call.1} parent=5 // pred_check
        _
      $region22: #{tpu_custom_call.1} parent=5 // pred_check_branch
        %110 = sbr.rel (%p107) target = $region24
      $region23: #{tpu_custom_call.1} parent=5 // pred_region
        %s111 = ssub.s32 %s15, 1
        %s112 = sand.u32 %s28, 1
        %s113 = scalar_lea.sflag [#allocation5], %s112
        %s114 = sand.u32 %s28, 1
        %s115 = smul.addr %s114, 16
        %s116 = scalar_lea.vmem [#allocation4], %s115
        // Predicated region
        $region25: #{tpu_custom_call.1} parent=23 // pred_check
          %p117 = pneg %p41
        $region26: #{tpu_custom_call.1} parent=23 // pred_check_branch
          %119 = sbr.rel (%p117) target = $region28
        $region27: #{tpu_custom_call.1} parent=23 // pred_region
          %120 = dma.done %s113, 256
        $region28: #{tpu_custom_call.1} parent=23 // pred_fallthru
          _
        %s121 = sand.u32 %s28, 1
        %s122 = scalar_lea.sflag [#allocation5], %s121
        %s123 = sand.u32 %s28, 1
        %s124 = smul.addr %s123, 16
        %s125 = scalar_lea.vmem [#allocation4], %s124
        %p126 = pneg %p41
        %p127 = pneg %p38
        %p128 = pneg %p67
        %p129 = pneg %p64
        %s130 = sand.u32 %s54, 1
        %s131 = scalar_lea.sflag [#allocation6], %s130
        %s132 = sand.u32 %s54, 1
        %s133 = smul.addr %s132, 16
        %s134 = scalar_lea.vmem [#allocation7], %s133
        %v136 = vld [vmem:[%s116] sm:$0xff]
        %v137 = vld [vmem:[%s116 + $0x8] sm:$0xff]
        %v138 = vpack.c.bf16 %v136, %v136
        %v139 = vpack.c.bf16 %v137, %v137
        %140 = vmatprep.subr.bf16.mxu0 %v139
        %141 = vmatpush1.bf16.xpose.msra.mxu0 %v138
        %142 = vmatprep.subr.bf16.mxu0 0
        %143 = vmatpush1.bf16.xpose.msra.mxu0 0
        %144 = vmatprep.subr.bf16.mxu0 0
        %145 = vmatpush1.bf16.xpose.msra.mxu0 0
        %146 = vmatprep.subr.bf16.mxu0 0
        %147 = vmatpush1.bf16.xpose.msra.mxu0 0
        %148 = vmatprep.subr.bf16.mxu0 0
        %149 = vmatpush1.bf16.xpose.msra.mxu0 0
        %150 = vmatprep.subr.bf16.mxu0 0
        %151 = vmatpush1.bf16.xpose.msra.mxu0 0
        %152 = vmatprep.subr.bf16.mxu0 0
        %153 = vmatpush1.bf16.xpose.msra.mxu0 0
        %154 = vmatprep.subr.bf16.mxu0 0
        %155 = vmatpush1.bf16.xpose.msra.mxu0 0
        %156 = vmatprep.subr.bf16.mxu0 0
        %157 = vmatpush1.bf16.xpose.msra.mxu0 0
        %158 = vmatprep.subr.bf16.mxu0 0
        %159 = vmatpush1.bf16.xpose.msra.mxu0 0
        %160 = vmatprep.subr.bf16.mxu0 0
        %161 = vmatpush1.bf16.xpose.msra.mxu0 0
        %162 = vmatprep.subr.bf16.mxu0 0
        %163 = vmatpush1.bf16.xpose.msra.mxu0 0
        %164 = vmatprep.subr.bf16.mxu0 0
        %165 = vmatpush1.bf16.xpose.msra.mxu0 0
        %166 = vmatprep.subr.bf16.mxu0 0
        %167 = vmatpush1.bf16.xpose.msra.mxu0 0
        %168 = vmatprep.subr.bf16.mxu0 0
        %169 = vmatpush1.bf16.xpose.msra.mxu0 0
        %170 = vmatprep.subr.bf16.mxu0 0
        %171 = vmatpush1.bf16.xpose.msra.mxu0 0
        %172 = vmatprep.mubr.bf16.mxu0 %v139
        %173 = vmatmul.mubr.bf16.gmra.mrb[0].mxu0 %v138
        %v174 = vpop.f32.mrb[0].mxu0
        %v175 = vadd.f32 0.0, %v174
        %v176 = vpop.f32.mrb[0].mxu0
        %v177 = vpop.f32.mrb[0].mxu0
        %v178 = vpop.f32.mrb[0].mxu0
        %179 = vdwg.mxu0
        %v180 = vlaneseq
        %v181 = vand.u32 %v180, 127
        %vm182 = vcmp.lt.s32.totalorder %v181, 4
        %v183 = vsel %vm182, %v175, 1e+30
        %vm184 = vcmask 64512
        %v185 = vsel %vm184, %v183, inf
        %186 = vmin.xlane.f32.xlu0 %v185
        %v187 = vpop.xlane.xlu0 %186
        %v188 = vsub.f32 %v187, %v183
        %v189 = vmul.f32 %v188, 1.442695
        %v190 = vpow.pop %v189
        %v191 = vsel %vm182, %v190, 0.0
        %v192 = vsel %vm184, %v191, 0.0
        %193 = vadd.xlane.f32.xlu0 %v192
        %v194 = vpop.xlane.xlu0 %193
        %v195 = vrcp.pop %v194
        %v196 = vmul.f32 %v191, %v195
        %s197 = sld [smem:[#allocation3]]
        %v198 = vstv %s197
        %v199 = vmul.f32 %v198, %v196
        %v200 = vpack.c.bf16 %v199, %v199
        %v202 = vsel %vm184, %v200, 0
        %vm204 = vcmask 1043456
        %v206 = vsel %vm204, %v138, 0
        %v209 = vsel %vm204, %v139, 0
        %211 = vmatprep.subr.bf16.mxu0 %v209
        %212 = vmatpush1.bf16.msra.mxu0 %v206
        %213 = vmatprep.subr.bf16.mxu0 0
        %214 = vmatpush1.bf16.msra.mxu0 0
        %215 = vmatprep.subr.bf16.mxu0 0
        %216 = vmatpush1.bf16.msra.mxu0 0
        %217 = vmatprep.subr.bf16.mxu0 0
        %218 = vmatpush1.bf16.msra.mxu0 0
        %219 = vmatprep.subr.bf16.mxu0 0
        %220 = vmatpush1.bf16.msra.mxu0 0
        %221 = vmatprep.subr.bf16.mxu0 0
        %222 = vmatpush1.bf16.msra.mxu0 0
        %223 = vmatprep.subr.bf16.mxu0 0
        %224 = vmatpush1.bf16.msra.mxu0 0
        %225 = vmatprep.subr.bf16.mxu0 0
        %226 = vmatpush1.bf16.msra.mxu0 0
        %227 = vmatprep.subr.bf16.mxu0 0
        %228 = vmatpush1.bf16.msra.mxu0 0
        %229 = vmatprep.subr.bf16.mxu0 0
        %230 = vmatpush1.bf16.msra.mxu0 0
        %231 = vmatprep.subr.bf16.mxu0 0
        %232 = vmatpush1.bf16.msra.mxu0 0
        %233 = vmatprep.subr.bf16.mxu0 0
        %234 = vmatpush1.bf16.msra.mxu0 0
        %235 = vmatprep.subr.bf16.mxu0 0
        %236 = vmatpush1.bf16.msra.mxu0 0
        %237 = vmatprep.subr.bf16.mxu0 0
        %238 = vmatpush1.bf16.msra.mxu0 0
        %239 = vmatprep.subr.bf16.mxu0 0
        %240 = vmatpush1.bf16.msra.mxu0 0
        %241 = vmatprep.subr.bf16.mxu0 0
        %242 = vmatpush1.bf16.msra.mxu0 0
        %243 = vmatprep.mubr.bf16.mxu0 0
        %244 = vmatmul.mubr.bf16.gmra.mrb[0].mxu0 %v202
        %v245 = vpop.f32.mrb[0].mxu0
        %v246 = vadd.f32 %v136, %v245
        %v247 = vpop.f32.mrb[0].mxu0
        %v248 = vadd.f32 %v137, %v247
        %v249 = vpop.f32.mrb[0].mxu0
        %v250 = vpop.f32.mrb[0].mxu0
        %251 = vdwg.mxu0
        %252 = vst [vmem:[%s134] sm:$0xff] %v246
        %253 = vst [vmem:[%s134 + $0x8] sm:$0xff] %v248
        %s254 = sand.u32 %s54, 1
        %s255 = scalar_lea.sflag [#allocation6], %s254
        %s256 = sand.u32 %s54, 1
        %s257 = smul.addr %s256, 16
        %s258 = scalar_lea.vmem [#allocation7], %s257
        // Predicated region
        $region29: #{tpu_custom_call.1} parent=23 // pred_check
          %p259 = pneg %p64
        $region30: #{tpu_custom_call.1} parent=23 // pred_check_branch
          %261 = sbr.rel (%p259) target = $region32
        $region31: #{tpu_custom_call.1} parent=23 // pred_region
          %s263 = ssub.s32 256, 256
          %264 = vsyncadd %s255, %s263
          %s265 = smul.addr %s20, 2
          %s266 = smul.addr %s265, 128
          %s267 = scalar_lea.hbm %s2, %s266
          %s269 = sshll.u32 %s258, 4
          %s270 = int_to_ptr.vmem [resolvable:$true] %s269
          %272 = dma.vmem_to_hbm [thread:$0]  %s270, 256, %s267, %s255
        $region32: #{tpu_custom_call.1} parent=23 // pred_fallthru
          _
      $region24: #{tpu_custom_call.1} parent=5 // pred_fallthru
        _
      %p273 = scmp.le.s32.totalorder 2, %s15
      // Predicated region
      $region33: #{tpu_custom_call.1} parent=5 // pred_check
        %p274 = pneg %p273
      $region34: #{tpu_custom_call.1} parent=5 // pred_check_branch
        %276 = sbr.rel (%p274) target = $region36
      $region35: #{tpu_custom_call.1} parent=5 // pred_region
        %s277 = ssub.s32 %s15, 2
        // Predicated region
        $region37: #{tpu_custom_call.1} parent=35 // pred_check
          %p278 = pneg %p70
        $region38: #{tpu_custom_call.1} parent=35 // pred_check_branch
          %280 = sbr.rel (%p278) target = $region40
        $region39: #{tpu_custom_call.1} parent=35 // pred_region
          %s281 = sand.u32 %s55, 1
          %s282 = scalar_lea.sflag [#allocation6], %s281
          %s283 = sand.u32 %s55, 1
          %s284 = smul.addr %s283, 16
          %s285 = scalar_lea.vmem [#allocation7], %s284
          %286 = dma.done %s282, 256
        $region40: #{tpu_custom_call.1} parent=35 // pred_fallthru
          _
      $region36: #{tpu_custom_call.1} parent=5 // pred_fallthru
        _
    $region6: #{tpu_custom_call.1} parent=1 // loop_footer
      %s19 = sadd.s32 1, %s15
    $region7: #{tpu_custom_call.1} parent=1 // loop_footer_branch
      %14 = sbr.rel target = $region3
    $region8: #{tpu_custom_call.1} parent=1 // loop_exit
      _
    %287 = vsyncpa [#allocation5], 1
    %s288 = scalar_lea.sflag [#allocation5], 1
    %289 = vsyncpa %s288, 1
    %290 = vsyncpa [#allocation6], 1
    %s291 = scalar_lea.sflag [#allocation6], 1
    %292 = vsyncpa %s291, 1

</llo_original>
